<compile_context>
chip_gen: v5e
topology: v5e:2x2
jax: 0.10.0
libtpu: 0.0.40
codegen_flags: <defaults>
</compile_context>

<pallas_src>
import functools

import jax
import jax.numpy as jnp
from jax import lax
from jax.experimental import pallas as pl
from jax.experimental.pallas import tpu as pltpu


def _round_up(x, m):
    return (x + m - 1) // m * m


def _cdiv(a, b):
    return (a + b - 1) // b


def _random_bits(shape, key, salt):
    """Per-element uint32 bits via a counter + murmur3 fmix32 finalizer.

    Pure jnp integer ops only, so it lowers both through Mosaic and in
    interpret mode (unlike pltpu.prng_seed / prng_random_bits).
    """
    r = lax.broadcasted_iota(jnp.int32, shape, 0).astype(jnp.uint32)
    c = lax.broadcasted_iota(jnp.int32, shape, 1).astype(jnp.uint32)
    x = r * jnp.uint32(shape[1]) + c
    x = x * jnp.uint32(0x9E3779B9) + key + jnp.uint32(salt & 0xFFFFFFFF)
    x = x ^ (x >> jnp.uint32(16))
    x = x * jnp.uint32(0x85EBCA6B)
    x = x ^ (x >> jnp.uint32(13))
    x = x * jnp.uint32(0xC2B2AE35)
    x = x ^ (x >> jnp.uint32(16))
    return x


def _prenet_kernel(seed_ref, x_ref, w1_ref, b1_ref, w2_ref, b2_ref, o_ref,
                   *, p, training):
    """One row-tile per grid step.

    seed_ref: (1,) int32 in SMEM (scalar prefetch)
    x_ref:    (TM, D_in)   input rows, features on lanes
    w1_ref:   (D_in, H)    fc1 weight (transposed, bf16) ; b1_ref: (1, H) f32
    w2_ref:   (H, D_out)   fc2 weight (transposed, bf16) ; b2_ref: (1, D_out) f32
    o_ref:    (TM, D_out)  output rows
    """
    cdt = w1_ref.dtype  # MXU compute dtype (bf16 by default)

    if training:
        # Mix seed and tile id with large odd constants -> decorrelated
        # streams per grid tile, deterministic under "parallel" semantics.
        key = (seed_ref[0].astype(jnp.uint32) * jnp.uint32(0x9E3779B1)
               + pl.program_id(0).astype(jnp.uint32) * jnp.uint32(0x85EBCA77))
        thr = jnp.uint32(min(int(round(p * 2.0 ** 32)), 2 ** 32 - 1))
        scale = jnp.float32(1.0 / (1.0 - p))

    def act(v, salt):
        # relu + inverted dropout fused into a single select (lean epilogue).
        if training:
            keep = _random_bits(v.shape, key, salt) >= thr
            return jnp.where(keep & (v > 0.0), v * scale, 0.0)
        return jnp.maximum(v, 0.0)

    # fc1 -> relu -> dropout  (bf16 MXU, f32 accumulation, bias in epilogue)
    x = x_ref[...].astype(cdt)
    h = jnp.dot(x, w1_ref[...], preferred_element_type=jnp.float32)
    h = act(h + b1_ref[...], salt=0x27220A95)

    # fc2 -> relu -> dropout
    y = jnp.dot(h.astype(cdt), w2_ref[...], preferred_element_type=jnp.float32)
    y = act(y + b2_ref[...], salt=0x51ED270B)

    o_ref[...] = y.astype(o_ref.dtype)


def prenet_forward(x, w1, b1, w2, b2, *, p=0.5, training=False, seed=0,
                   block_rows=512, compute_dtype=jnp.bfloat16):
    """PreNet forward.

    x:  (..., input_size)
    w1: (hidden_size, input_size)   b1: (hidden_size,)     (torch Linear layout)
    w2: (output_size, hidden_size)  b2: (output_size,)
    """
    assert 0.0 <= p < 1.0, "dropout p must be in [0, 1)"
    *lead, d_in = x.shape
    h_dim, d_in_w = w1.shape
    d_out, h_dim_w = w2.shape
    assert d_in_w == d_in and h_dim_w == h_dim

    x2 = x.reshape(-1, d_in)
    r = x2.shape[0]

    # ---- row tiling ---------------------------------------------------------
    bx = jnp.dtype(x.dtype).itemsize
    bw = jnp.dtype(compute_dtype).itemsize
    # Rough per-row VMEM bytes: double-buffered x/out tiles + f32/bf16
    # intermediates + random-bit temporaries.
    per_row = (2 * d_in * bx + 2 * d_out * bx
               + 4 * (h_dim + d_out)            # f32 h / y
               + 2 * (d_in + h_dim)             # bf16 casts
               + 4 * (h_dim + d_out))           # uint32 bits
    fixed = 2 * (d_in * h_dim + h_dim * d_out + h_dim + d_out) * bw
    tile_budget = 40 * 1024 * 1024               # safe across v5e/v6e/v7x
    tm_cap = max(8, ((tile_budget - fixed) // max(per_row, 1)) // 8 * 8)

    n_tiles = _cdiv(r, block_rows)
    if r > 8:
        n_tiles = max(n_tiles, 2)                # keep both v7x TCs busy
    tm = _round_up(_cdiv(r, n_tiles), 8)         # padding waste < 8 rows/tile
    tm = min(tm, tm_cap, _round_up(r, 8))
    r_p = _round_up(r, tm)

    if r_p != r:                                 # cheap row pad only if needed
        x2 = jnp.pad(x2, ((0, r_p - r), (0, 0)))

    # Feature dims stay full-extent in the BlockSpecs (no HBM pad/slice round
    # trip); weights transposed to (in, out) and cast once to the MXU dtype.
    w1_t = w1.T.astype(compute_dtype)            # (D_in, H)
    w2_t = w2.T.astype(compute_dtype)            # (H, D_out)
    b1_r = b1.reshape(1, h_dim).astype(jnp.float32)
    b2_r = b2.reshape(1, d_out).astype(jnp.float32)
    seed_arr = jnp.asarray([seed], jnp.int32)

    vmem_limit = int(min(48 * 1024 * 1024,
                         max(16 * 1024 * 1024,
                             fixed + tm * per_row + (4 << 20))))

    kernel = functools.partial(_prenet_kernel, p=float(p),
                               training=bool(training))

    out = pl.pallas_call(
        kernel,
        out_shape=jax.ShapeDtypeStruct((r_p, d_out), x.dtype),
        grid_spec=pltpu.PrefetchScalarGridSpec(
            num_scalar_prefetch=1,
            grid=(r_p // tm,),
            in_specs=[
                pl.BlockSpec((tm, d_in), lambda i, s: (i, 0)),
                pl.BlockSpec((d_in, h_dim), lambda i, s: (0, 0)),
                pl.BlockSpec((1, h_dim), lambda i, s: (0, 0)),
                pl.BlockSpec((h_dim, d_out), lambda i, s: (0, 0)),
                pl.BlockSpec((1, d_out), lambda i, s: (0, 0)),
            ],
            out_specs=pl.BlockSpec((tm, d_out), lambda i, s: (i, 0)),
        ),
        compiler_params=pltpu.CompilerParams(
            dimension_semantics=("parallel",),
            vmem_limit_bytes=vmem_limit,
        ),
    )(seed_arr, x2, w1_t, b1_r, w2_t, b2_r)

    if r_p != r:
        out = out[:r]
    return out.reshape(*lead, d_out)


def _xavier_uniform(key, shape, gain=1.0):
    # torch nn.Linear weight shape (out, in): fan_in = in, fan_out = out.
    fan_out, fan_in = shape
    bound = gain * jnp.sqrt(6.0 / (fan_in + fan_out))
    return jax.random.uniform(key, shape, jnp.float32, -bound, bound)


if __name__ == "__main__":
    key = jax.random.PRNGKey(0)
    k_x, k_w1, k_b1, k_w2, k_b2 = jax.random.split(key, 5)

    # Small shapes consistent with PreNet: batch=2, seq=8,
    # input_size=32, hidden_size=64, output_size=32, p=0.5.
    B, S, D_IN, H, D_OUT, P = 2, 8, 32, 64, 32, 0.5

    x = jax.random.normal(k_x, (B, S, D_IN), jnp.float32)

    w1 = _xavier_uniform(k_w1, (H, D_IN), gain=1.0)      # w_init='linear' -> gain 1
    b1 = jax.random.uniform(k_b1, (H,), jnp.float32,
                            -1.0 / jnp.sqrt(D_IN), 1.0 / jnp.sqrt(D_IN))
    w2 = _xavier_uniform(k_w2, (D_OUT, H), gain=1.0)
    b2 = jax.random.uniform(k_b2, (D_OUT,), jnp.float32,
                            -1.0 / jnp.sqrt(H), 1.0 / jnp.sqrt(H))

    # Eval mode (dropout = identity): compare against a reference that mirrors
    # the kernel's bf16-matmul / f32-accumulate math.
    out_eval = prenet_forward(x, w1, b1, w2, b2, p=P, training=False)
    out_eval = jax.block_until_ready(out_eval)

    cd = jnp.bfloat16
    ref_h = jnp.einsum("bsd,hd->bsh", x.astype(cd), w1.astype(cd),
                       preferred_element_type=jnp.float32) + b1
    ref_h = jnp.maximum(ref_h, 0.0)
    ref = jnp.einsum("bsh,oh->bso", ref_h.astype(cd), w2.astype(cd),
                     preferred_element_type=jnp.float32) + b2
    ref = jnp.maximum(ref, 0.0)
    assert out_eval.shape == (B, S, D_OUT)
    assert jnp.allclose(out_eval, ref, atol=1e-4, rtol=1e-4)

    # Training mode: exercises the in-kernel dropout path.
    out_train = prenet_forward(x, w1, b1, w2, b2, p=P, training=True, seed=123)
    out_train = jax.block_until_ready(out_train)
    assert out_train.shape == (B, S, D_OUT)
    assert bool(jnp.all(jnp.isfinite(out_train)))
    assert bool(jnp.all(out_train >= 0.0))   # relu + inverted dropout keep sign
    assert not bool(jnp.allclose(out_train, out_eval))  # dropout actually fired

    print("KERNEL_OK")
</pallas_src>

<mosaic_0001>
module attributes {stable_mosaic.version = 11 : i64} {
  func.func @_prenet_kernel(%arg0: i32, %arg1: memref<1xi32, #tpu.memory_space<smem>>, %arg2: memref<8x32xf32, #tpu.memory_space<vmem>>, %arg3: memref<32x64xbf16, #tpu.memory_space<vmem>>, %arg4: memref<1x64xf32, #tpu.memory_space<vmem>>, %arg5: memref<64x32xbf16, #tpu.memory_space<vmem>>, %arg6: memref<1x32xf32, #tpu.memory_space<vmem>>, %arg7: memref<8x32xf32, #tpu.memory_space<vmem>>) attributes {dimension_semantics = [#tpu.dimension_semantics<parallel>], iteration_bounds = array<i64: 2>, scalar_prefetch = 1 : i64, scratch_operands = 0 : i64, tpu.core_type = #tpu.core_type<tc>, window_params = [{transform_indices = @transform_0, window_bounds = array<i64: 8, 32>}, {pipeline_mode = #tpu.pipeline_mode<synchronous>, transform_indices = @transform_1, window_bounds = array<i64: 32, 64>}, {pipeline_mode = #tpu.pipeline_mode<synchronous>, transform_indices = @transform_2, window_bounds = array<i64: 1, 64>}, {pipeline_mode = #tpu.pipeline_mode<synchronous>, transform_indices = @transform_3, window_bounds = array<i64: 64, 32>}, {pipeline_mode = #tpu.pipeline_mode<synchronous>, transform_indices = @transform_4, window_bounds = array<i64: 1, 32>}, {transform_indices = @transform_5, window_bounds = array<i64: 8, 32>}]} {
    %c0 = arith.constant 0 : index
    %c0_0 = arith.constant 0 : index
    %0 = vector.load %arg2[%c0, %c0_0] : memref<8x32xf32, #tpu.memory_space<vmem>>, vector<8x32xf32>
    %1 = arith.truncf %0 : vector<8x32xf32> to vector<8x32xbf16>
    %c0_1 = arith.constant 0 : index
    %c0_2 = arith.constant 0 : index
    %2 = vector.load %arg3[%c0_1, %c0_2] : memref<32x64xbf16, #tpu.memory_space<vmem>>, vector<32x64xbf16>
    %cst = arith.constant dense<0.000000e+00> : vector<8x64xf32>
    %3 = tpu.matmul %1, %2, %cst {dimension_numbers = #tpu.dot_dimension_numbers<[1], [0], [0], [1], [0, 0, 1, 1], [], []>} : vector<8x32xbf16>, vector<32x64xbf16>, vector<8x64xf32> -> vector<8x64xf32>
    %c0_3 = arith.constant 0 : index
    %c0_4 = arith.constant 0 : index
    %4 = vector.load %arg4[%c0_3, %c0_4] : memref<1x64xf32, #tpu.memory_space<vmem>>, vector<1x64xf32>
    %5 = vector.broadcast %4 : vector<1x64xf32> to vector<8x64xf32>
    %6 = arith.addf %3, %5 : vector<8x64xf32>
    %cst_5 = arith.constant 0.000000e+00 : f32
    %7 = vector.broadcast %cst_5 : f32 to vector<8x64xf32>
    %8 = arith.maximumf %6, %7 : vector<8x64xf32>
    %9 = arith.truncf %8 : vector<8x64xf32> to vector<8x64xbf16>
    %c0_6 = arith.constant 0 : index
    %c0_7 = arith.constant 0 : index
    %10 = vector.load %arg5[%c0_6, %c0_7] : memref<64x32xbf16, #tpu.memory_space<vmem>>, vector<64x32xbf16>
    %cst_8 = arith.constant dense<0.000000e+00> : vector<8x32xf32>
    %11 = tpu.matmul %9, %10, %cst_8 {dimension_numbers = #tpu.dot_dimension_numbers<[1], [0], [0], [1], [0, 0, 1, 1], [], []>} : vector<8x64xbf16>, vector<64x32xbf16>, vector<8x32xf32> -> vector<8x32xf32>
    %c0_9 = arith.constant 0 : index
    %c0_10 = arith.constant 0 : index
    %12 = vector.load %arg6[%c0_9, %c0_10] : memref<1x32xf32, #tpu.memory_space<vmem>>, vector<1x32xf32>
    %13 = vector.broadcast %12 : vector<1x32xf32> to vector<8x32xf32>
    %14 = arith.addf %11, %13 : vector<8x32xf32>
    %cst_11 = arith.constant 0.000000e+00 : f32
    %15 = vector.broadcast %cst_11 : f32 to vector<8x32xf32>
    %16 = arith.maximumf %14, %15 : vector<8x32xf32>
    %c0_12 = arith.constant 0 : index
    %c0_13 = arith.constant 0 : index
    %17 = vector.load %arg7[%c0_12, %c0_13] : memref<8x32xf32, #tpu.memory_space<vmem>>, vector<8x32xf32>
    tpu.vector_store %arg7[%c0_12, %c0_13], %16 {strides = array<i32>} : memref<8x32xf32, #tpu.memory_space<vmem>>, vector<8x32xf32>,
    return
  }
  func.func @transform_0(%arg0: i32, %arg1: memref<1xi32, #tpu.memory_space<smem>>) -> (i32, i32) {
    %c0_i32 = arith.constant 0 : i32
    %c0_i32_0 = arith.constant 0 : i32
    return %arg0, %c0_i32 : i32, i32
  }
  func.func @transform_1(%arg0: i32, %arg1: memref<1xi32, #tpu.memory_space<smem>>) -> (i32, i32) {
    %c0_i32 = arith.constant 0 : i32
    %c0_i32_0 = arith.constant 0 : i32
    %c0_i32_1 = arith.constant 0 : i32
    return %c0_i32, %c0_i32_0 : i32, i32
  }
  func.func @transform_2(%arg0: i32, %arg1: memref<1xi32, #tpu.memory_space<smem>>) -> (i32, i32) {
    %c0_i32 = arith.constant 0 : i32
    %c0_i32_0 = arith.constant 0 : i32
    %c0_i32_1 = arith.constant 0 : i32
    return %c0_i32, %c0_i32_0 : i32, i32
  }
  func.func @transform_3(%arg0: i32, %arg1: memref<1xi32, #tpu.memory_space<smem>>) -> (i32, i32) {
    %c0_i32 = arith.constant 0 : i32
    %c0_i32_0 = arith.constant 0 : i32
    %c0_i32_1 = arith.constant 0 : i32
    return %c0_i32, %c0_i32_0 : i32, i32
  }
  func.func @transform_4(%arg0: i32, %arg1: memref<1xi32, #tpu.memory_space<smem>>) -> (i32, i32) {
    %c0_i32 = arith.constant 0 : i32
    %c0_i32_0 = arith.constant 0 : i32
    %c0_i32_1 = arith.constant 0 : i32
    return %c0_i32, %c0_i32_0 : i32, i32
  }
  func.func @transform_5(%arg0: i32, %arg1: memref<1xi32, #tpu.memory_space<smem>>) -> (i32, i32) {
    %c0_i32 = arith.constant 0 : i32
    %c0_i32_0 = arith.constant 0 : i32
    return %arg0, %c0_i32 : i32, i32
  }
}

</mosaic_0001>

<llo_original>
// kernel: tpu_custom_call.1
$region0: #{tpu_custom_call.1}
  #allocation0 [shape = 'u32[]', space=smem, size = 0x4, offset = 0x4, fixed_abs, tag = 'smem constant byte address 0x4 - core index']
  #allocation1 [shape = 'u32[72,128]{1,0:T(1,128)}', space=vmem, size = 0x9000, scoped, tag = 'internal scratch']
  #allocation2 [shape = 's32[1]{0}', space=sflag, size = 0x4, scoped, tag = 'scoped memory for tpu_custom_call.1']
  #allocation3 [shape = 's32[1]{0:T(128)S(6)}', space=smem, size = 0x200, scoped, tag = 'prefetched SMEM operand 0']
  %s0 = inlined_call_operand.<no memory space> [shape: s32[1], index: 0, kind: input, shape index: {}]
  %s1 = inlined_call_operand.vmem [shape: f32[16,32], index: 1, kind: input, shape index: {}]
  %s2 = inlined_call_operand.vmem [shape: bf16[32,64], index: 2, kind: input, shape index: {}]
  %s3 = inlined_call_operand.vmem [shape: f32[1,64], index: 3, kind: input, shape index: {}]
  %s4 = inlined_call_operand.vmem [shape: bf16[64,32], index: 4, kind: input, shape index: {}]
  %s5 = inlined_call_operand.vmem [shape: f32[1,32], index: 5, kind: input, shape index: {}]
  %s6 = inlined_call_operand.hbm [shape: f32[16,32], index: 6, kind: output, shape index: {}]
  %s7 = sld [smem:[#allocation0]]
  $region53: #{tpu_custom_call.1} parent=0
    _
  %s9 = ssub.s32 1, %s7
  %s10 = scalar_select 0, %s9, %s7
  %11 = sst [smem:[#allocation3]] %s0
  $region1: #{tpu_custom_call.1} parent=0
    #allocation4 [shape = 'u8[8192]{0}', space=vmem, size = 0x2000, scoped, tag = 'output window, operand 0']
    #allocation5 [shape = 's32[2]{0}', space=sflag, size = 0x8, scoped, tag = 'scoped memory for tpu_custom_call.1']
    %12 = vsyncpa [#allocation5], 0
    %s13 = scalar_lea.sflag [#allocation5], 1
    %14 = vsyncpa %s13, 0
    loop: start=0, step=1, limit=4
    $region2: #{tpu_custom_call.1} parent=1 // loop_pre_header
      _
    $region3: #{tpu_custom_call.1} parent=1 // loop_header
      %s16 = sphi 0, %s20
      %p17 = scmp.ge.s32.totalorder %s16, 4
      %s26 = sphi 0, %s28
      %s29 = sphi 0, %s26
      %s30 = sphi 0, %s29
      %s46 = sphi 0, %s30
      %s50 = sphi 0, %s50
      %s52 = sphi 0, %s50
      %s53 = sphi 0, %s52
      %s67 = sphi 0, %s53
      %s71 = sphi 0, %s71
      %s73 = sphi 0, %s71
      %s74 = sphi 0, %s73
      %s88 = sphi 0, %s74
      %s92 = sphi 0, %s92
      %s94 = sphi 0, %s92
      %s95 = sphi 0, %s94
      %s109 = sphi 0, %s95
      %s113 = sphi 0, %s113
      %s115 = sphi 0, %s113
      %s116 = sphi 0, %s115
      %s130 = sphi 0, %s116
      %s136 = sphi 0, %s138
      %s139 = sphi 0, %s136
      %s140 = sphi 0, %s139
      %s156 = sphi 0, %s140
    $region4: #{tpu_custom_call.1} parent=1 // loop_header_branch
      %19 = sbr.rel (%p17) target = $region8
    $region5: #{tpu_custom_call.1} parent=1 // loop_body
      %s21 = ssub.s32 %s16, 1
      %s22 = ssub.s32 %s16, 2
      %s23 = sadd.s32 %s16, 1
      %s24 = ssub.s32 %s16, %s23
      %p25 = scmp.eq.s32.totalorder %s24, 0
      %s27 = sadd.s32 %s26, 1
      %s28 = scalar_select %p25, %s26, %s27
      %p31 = pneg %p25
      %p32 = scmp.eq.s32.totalorder %s16, 1
      %p33 = por %p31, %p32
      %p34 = scmp.ne.s32.totalorder %s26, %s29
      %p35 = scmp.eq.s32.totalorder %s16, 0
      %p36 = por %p34, %p35
      %p37 = scmp.ne.s32.totalorder %s26, %s29
      %p38 = scmp.eq.s32.totalorder %s21, 1
      %p39 = por %p37, %p38
      %p40 = scmp.ne.s32.totalorder %s29, %s30
      %p41 = scmp.eq.s32.totalorder %s21, 0
      %p42 = por %p40, %p41
      %p43 = scmp.ne.s32.totalorder %s29, %s30
      %p44 = scmp.eq.s32.totalorder %s22, 1
      %p45 = por %p43, %p44
      %p47 = scmp.ne.s32.totalorder %s30, %s46
      %p48 = scmp.eq.s32.totalorder %s22, 0
      %p49 = por %p47, %p48
      %s51 = sadd.s32 %s50, 1
      %p54 = scmp.eq.s32.totalorder %s16, 1
      %p55 = scmp.ne.s32.totalorder %s50, %s52
      %p56 = scmp.eq.s32.totalorder %s16, 0
      %p57 = por %p55, %p56
      %p58 = scmp.ne.s32.totalorder %s50, %s52
      %p59 = scmp.eq.s32.totalorder %s21, 1
      %p60 = por %p58, %p59
      %p61 = scmp.ne.s32.totalorder %s52, %s53
      %p62 = scmp.eq.s32.totalorder %s21, 0
      %p63 = por %p61, %p62
      %p64 = scmp.ne.s32.totalorder %s52, %s53
      %p65 = scmp.eq.s32.totalorder %s22, 1
      %p66 = por %p64, %p65
      %p68 = scmp.ne.s32.totalorder %s53, %s67
      %p69 = scmp.eq.s32.totalorder %s22, 0
      %p70 = por %p68, %p69
      %s72 = sadd.s32 %s71, 1
      %p75 = scmp.eq.s32.totalorder %s16, 1
      %p76 = scmp.ne.s32.totalorder %s71, %s73
      %p77 = scmp.eq.s32.totalorder %s16, 0
      %p78 = por %p76, %p77
      %p79 = scmp.ne.s32.totalorder %s71, %s73
      %p80 = scmp.eq.s32.totalorder %s21, 1
      %p81 = por %p79, %p80
      %p82 = scmp.ne.s32.totalorder %s73, %s74
      %p83 = scmp.eq.s32.totalorder %s21, 0
      %p84 = por %p82, %p83
      %p85 = scmp.ne.s32.totalorder %s73, %s74
      %p86 = scmp.eq.s32.totalorder %s22, 1
      %p87 = por %p85, %p86
      %p89 = scmp.ne.s32.totalorder %s74, %s88
      %p90 = scmp.eq.s32.totalorder %s22, 0
      %p91 = por %p89, %p90
      %s93 = sadd.s32 %s92, 1
      %p96 = scmp.eq.s32.totalorder %s16, 1
      %p97 = scmp.ne.s32.totalorder %s92, %s94
      %p98 = scmp.eq.s32.totalorder %s16, 0
      %p99 = por %p97, %p98
      %p100 = scmp.ne.s32.totalorder %s92, %s94
      %p101 = scmp.eq.s32.totalorder %s21, 1
      %p102 = por %p100, %p101
      %p103 = scmp.ne.s32.totalorder %s94, %s95
      %p104 = scmp.eq.s32.totalorder %s21, 0
      %p105 = por %p103, %p104
      %p106 = scmp.ne.s32.totalorder %s94, %s95
      %p107 = scmp.eq.s32.totalorder %s22, 1
      %p108 = por %p106, %p107
      %p110 = scmp.ne.s32.totalorder %s95, %s109
      %p111 = scmp.eq.s32.totalorder %s22, 0
      %p112 = por %p110, %p111
      %s114 = sadd.s32 %s113, 1
      %p117 = scmp.eq.s32.totalorder %s16, 1
      %p118 = scmp.ne.s32.totalorder %s113, %s115
      %p119 = scmp.eq.s32.totalorder %s16, 0
      %p120 = por %p118, %p119
      %p121 = scmp.ne.s32.totalorder %s113, %s115
      %p122 = scmp.eq.s32.totalorder %s21, 1
      %p123 = por %p121, %p122
      %p124 = scmp.ne.s32.totalorder %s115, %s116
      %p125 = scmp.eq.s32.totalorder %s21, 0
      %p126 = por %p124, %p125
      %p127 = scmp.ne.s32.totalorder %s115, %s116
      %p128 = scmp.eq.s32.totalorder %s22, 1
      %p129 = por %p127, %p128
      %p131 = scmp.ne.s32.totalorder %s116, %s130
      %p132 = scmp.eq.s32.totalorder %s22, 0
      %p133 = por %p131, %p132
      %s134 = ssub.s32 %s16, %s23
      %p135 = scmp.eq.s32.totalorder %s134, 0
      %s137 = sadd.s32 %s136, 1
      %s138 = scalar_select %p135, %s136, %s137
      %p141 = pneg %p135
      %p142 = scmp.eq.s32.totalorder %s16, 1
      %p143 = por %p141, %p142
      %p144 = scmp.ne.s32.totalorder %s136, %s139
      %p145 = scmp.eq.s32.totalorder %s16, 0
      %p146 = por %p144, %p145
      %p147 = scmp.ne.s32.totalorder %s136, %s139
      %p148 = scmp.eq.s32.totalorder %s21, 1
      %p149 = por %p147, %p148
      %p150 = scmp.ne.s32.totalorder %s139, %s140
      %p151 = scmp.eq.s32.totalorder %s21, 0
      %p152 = por %p150, %p151
      %p153 = scmp.ne.s32.totalorder %s139, %s140
      %p154 = scmp.eq.s32.totalorder %s22, 1
      %p155 = por %p153, %p154
      %p157 = scmp.ne.s32.totalorder %s140, %s156
      %p158 = scmp.eq.s32.totalorder %s22, 0
      %p159 = por %p157, %p158
      %p160 = scmp.le.s32.totalorder 1, %s16
      %p161 = scmp.lt.s32.totalorder %s16, 3
      %p162 = pnand %p160, %p161
      %p163 = pneg %p162
      // Predicated region
      $region9: #{tpu_custom_call.1} parent=5 // pred_check
        _
      $region10: #{tpu_custom_call.1} parent=5 // pred_check_branch
        %165 = sbr.rel (%p162) target = $region12
      $region11: #{tpu_custom_call.1} parent=5 // pred_region
        %s166 = ssub.s32 %s16, 1
        // Predicated region
        $region13: #{tpu_custom_call.1} parent=11 // pred_check
          %p167 = pneg %p63
        $region14: #{tpu_custom_call.1} parent=11 // pred_check_branch
          %169 = sbr.rel (%p167) target = $region16
        $region15: #{tpu_custom_call.1} parent=11 // pred_region
          _
        $region16: #{tpu_custom_call.1} parent=11 // pred_fallthru
          _
        // Predicated region
        $region17: #{tpu_custom_call.1} parent=11 // pred_check
          %p170 = pneg %p84
        $region18: #{tpu_custom_call.1} parent=11 // pred_check_branch
          %172 = sbr.rel (%p170) target = $region20
        $region19: #{tpu_custom_call.1} parent=11 // pred_region
          _
        $region20: #{tpu_custom_call.1} parent=11 // pred_fallthru
          _
        // Predicated region
        $region21: #{tpu_custom_call.1} parent=11 // pred_check
          %p173 = pneg %p105
        $region22: #{tpu_custom_call.1} parent=11 // pred_check_branch
          %175 = sbr.rel (%p173) target = $region24
        $region23: #{tpu_custom_call.1} parent=11 // pred_region
          _
        $region24: #{tpu_custom_call.1} parent=11 // pred_fallthru
          _
        // Predicated region
        $region25: #{tpu_custom_call.1} parent=11 // pred_check
          %p176 = pneg %p126
        $region26: #{tpu_custom_call.1} parent=11 // pred_check_branch
          %178 = sbr.rel (%p176) target = $region28
        $region27: #{tpu_custom_call.1} parent=11 // pred_region
          _
        $region28: #{tpu_custom_call.1} parent=11 // pred_fallthru
          _
      $region12: #{tpu_custom_call.1} parent=5 // pred_fallthru
        _
      %p179 = scmp.lt.s32.totalorder %s16, 2
      // Predicated region
      $region29: #{tpu_custom_call.1} parent=5 // pred_check
        %p180 = pneg %p179
      $region30: #{tpu_custom_call.1} parent=5 // pred_check_branch
        %182 = sbr.rel (%p180) target = $region32
      $region31: #{tpu_custom_call.1} parent=5 // pred_region
        // Predicated region
        $region33: #{tpu_custom_call.1} parent=31 // pred_check
          %p183 = pneg %p36
        $region34: #{tpu_custom_call.1} parent=31 // pred_check_branch
          %185 = sbr.rel (%p183) target = $region36
        $region35: #{tpu_custom_call.1} parent=31 // pred_region
          %p186 = scmp.lt.s32.totalorder %s16, 1
          %s187 = scalar_select %p186, %s16, 1
          %s188 = smul.addr %s187, 8
          %s189 = scalar_lea.vmem %s1, %s188
        $region36: #{tpu_custom_call.1} parent=31 // pred_fallthru
          _
      $region32: #{tpu_custom_call.1} parent=5 // pred_fallthru
        _
      %p190 = scmp.le.s32.totalorder 1, %s16
      %p191 = scmp.lt.s32.totalorder %s16, 3
      %p192 = pnand %p190, %p191
      %p193 = pneg %p192
      // Predicated region
      $region37: #{tpu_custom_call.1} parent=5 // pred_check
        _
      $region38: #{tpu_custom_call.1} parent=5 // pred_check_branch
        %195 = sbr.rel (%p192) target = $region40
      $region39: #{tpu_custom_call.1} parent=5 // pred_region
        %s196 = ssub.s32 %s16, 1
        %p197 = scmp.lt.s32.totalorder %s21, 1
        %s198 = scalar_select %p197, %s21, 1
        %s199 = smul.addr %s198, 8
        %s200 = scalar_lea.vmem %s1, %s199
        %p201 = pneg %p42
        %p202 = pneg %p39
        %p203 = pneg %p63
        %p204 = pneg %p60
        %p205 = pneg %p84
        %p206 = pneg %p81
        %p207 = pneg %p105
        %p208 = pneg %p102
        %p209 = pneg %p126
        %p210 = pneg %p123
        %p211 = pneg %p152
        %p212 = pneg %p149
        %s213 = sand.u32 %s139, 1
        %s214 = scalar_lea.sflag [#allocation5], %s213
        %s215 = sand.u32 %s139, 1
        %s216 = smul.addr %s215, 8
        %s217 = scalar_lea.vmem [#allocation4], %s216
        %p218 = scmp.lt.s32.totalorder %s21, 1
        %s219 = scalar_select %p218, %s21, 1
        %s220 = smul.addr %s219, 8
        %s221 = scalar_lea.vmem %s1, %s220
        %v223 = vld [vmem:[%s221] sm:$0xff]
        %v224 = vpack.c.bf16 %v223, %v223
        %v225 = vld [vmem:[%s2] sm:$0xf]
        %v226 = vld [vmem:[%s2 + $0x4] sm:$0xf]
        %v227 = vld [vmem:[%s2 + $0x8] sm:$0xf]
        %v228 = vld [vmem:[%s2 + $0xc] sm:$0xf]
        %v229 = vld [vmem:[%s3] sm:$0x1]
        %v231 = vperm.slane %v229, 0
        %v237 = vunpack.c.l.b16 %v225
        %v238 = vunpack.c.l.b16 %v226
        %v239 = vunpack.c.l.b16 %v227
        %v240 = vunpack.c.l.b16 %v228
        %v241 = vpack.c.b16 %v238, %v237
        %v242 = vpack.c.b16 %v240, %v239
        %vm245 = vcmask 261120
        %v247 = vsel %vm245, %v224, 0
        %249 = vmatpush.bf16.msra.mxu0 0
        %250 = vmatpush.bf16.msra.mxu0 0
        %251 = vmatpush.bf16.msra.mxu0 0
        %252 = vmatpush.bf16.msra.mxu0 0
        %253 = vmatpush.bf16.msra.mxu0 0
        %254 = vmatpush.bf16.msra.mxu0 0
        %255 = vmatpush.bf16.msra.mxu0 %v242
        %256 = vmatpush.bf16.msra.mxu0 %v241
        %257 = vmatmul.bf16.gmra.mxu0 %v247
        %v258 = vpop.f32.mrf.mxu0
        %v259 = vadd.f32 %v231, %v258
        %v260 = vpop.f32.mrf.mxu0
        %261 = vdwg.mxu0
        %v262 = vmax.f32 %v259, 0.0
        %v263 = vpack.c.bf16 %v262, %v262
        %v264 = vld [vmem:[%s4] sm:$0xf]
        %v265 = vld [vmem:[%s4 + $0x4] sm:$0xf]
        %v266 = vld [vmem:[%s4 + $0x8] sm:$0xf]
        %v267 = vld [vmem:[%s4 + $0xc] sm:$0xf]
        %v268 = vld [vmem:[%s4 + $0x10] sm:$0xf]
        %v269 = vld [vmem:[%s4 + $0x14] sm:$0xf]
        %v270 = vld [vmem:[%s4 + $0x18] sm:$0xf]
        %v271 = vld [vmem:[%s4 + $0x1c] sm:$0xf]
        %v272 = vld [vmem:[%s5] sm:$0x1]
        %v274 = vperm.slane %v272, 0
        %v284 = vunpack.c.l.b16 %v264
        %v285 = vunpack.c.l.b16 %v265
        %v286 = vunpack.c.l.b16 %v266
        %v287 = vunpack.c.l.b16 %v267
        %v288 = vunpack.c.l.b16 %v268
        %v289 = vunpack.c.l.b16 %v269
        %v290 = vunpack.c.l.b16 %v270
        %v291 = vunpack.c.l.b16 %v271
        %v292 = vpack.c.b16 %v285, %v284
        %v293 = vpack.c.b16 %v287, %v286
        %v294 = vpack.c.b16 %v289, %v288
        %v295 = vpack.c.b16 %v291, %v290
        %vm300 = vcmask 523264
        %v302 = vsel %vm300, %v263, 0
        %304 = vmatpush.bf16.msra.mxu0 0
        %305 = vmatpush.bf16.msra.mxu0 0
        %306 = vmatpush.bf16.msra.mxu0 0
        %307 = vmatpush.bf16.msra.mxu0 0
        %308 = vmatpush.bf16.msra.mxu0 %v295
        %309 = vmatpush.bf16.msra.mxu0 %v294
        %310 = vmatpush.bf16.msra.mxu0 %v293
        %311 = vmatpush.bf16.msra.mxu0 %v292
        %312 = vmatmul.bf16.gmra.mxu0 %v302
        %v313 = vpop.f32.mrf.mxu0
        %v314 = vadd.f32 %v274, %v313
        %v315 = vpop.f32.mrf.mxu0
        %316 = vdwg.mxu0
        %v317 = vmax.f32 %v314, 0.0
        %318 = vst.msk [vmem:[%s217] sm:$0xff] %vm245, %v317
        %s319 = sand.u32 %s139, 1
        %s320 = scalar_lea.sflag [#allocation5], %s319
        %s321 = sand.u32 %s139, 1
        %s322 = smul.addr %s321, 8
        %s323 = scalar_lea.vmem [#allocation4], %s322
        // Predicated region
        $region41: #{tpu_custom_call.1} parent=39 // pred_check
          %p324 = pneg %p149
        $region42: #{tpu_custom_call.1} parent=39 // pred_check_branch
          %326 = sbr.rel (%p324) target = $region44
        $region43: #{tpu_custom_call.1} parent=39 // pred_region
          %328 = vsyncadd %s320, 0
          %s329 = smul.addr %s21, 8
          %s330 = scalar_lea.hbm %s6, %s329
          %s332 = sshll.u32 %s323, 4
          %s333 = int_to_ptr.vmem [resolvable:$true] %s332
          %s334 = sshll.u32 %s330, 4
          %s335 = int_to_ptr.hbm [resolvable:$true] %s334
          %337 = dma.vmem_to_hbm [thread:$0]  %s333, 128, %s335, %s320
        $region44: #{tpu_custom_call.1} parent=39 // pred_fallthru
          _
      $region40: #{tpu_custom_call.1} parent=5 // pred_fallthru
        _
      %p338 = scmp.le.s32.totalorder 2, %s16
      // Predicated region
      $region45: #{tpu_custom_call.1} parent=5 // pred_check
        %p339 = pneg %p338
      $region46: #{tpu_custom_call.1} parent=5 // pred_check_branch
        %341 = sbr.rel (%p339) target = $region48
      $region47: #{tpu_custom_call.1} parent=5 // pred_region
        %s342 = ssub.s32 %s16, 2
        // Predicated region
        $region49: #{tpu_custom_call.1} parent=47 // pred_check
          %p343 = pneg %p155
        $region50: #{tpu_custom_call.1} parent=47 // pred_check_branch
          %345 = sbr.rel (%p343) target = $region52
        $region51: #{tpu_custom_call.1} parent=47 // pred_region
          %s346 = sand.u32 %s140, 1
          %s347 = scalar_lea.sflag [#allocation5], %s346
          %s348 = sand.u32 %s140, 1
          %s349 = smul.addr %s348, 8
          %s350 = scalar_lea.vmem [#allocation4], %s349
          %352 = dma.done %s347, 128
        $region52: #{tpu_custom_call.1} parent=47 // pred_fallthru
          _
      $region48: #{tpu_custom_call.1} parent=5 // pred_fallthru
        _
    $region6: #{tpu_custom_call.1} parent=1 // loop_footer
      %s20 = sadd.s32 1, %s16
    $region7: #{tpu_custom_call.1} parent=1 // loop_footer_branch
      %15 = sbr.rel target = $region3
    $region8: #{tpu_custom_call.1} parent=1 // loop_exit
      _
    %353 = vsyncpa [#allocation5], 1
    %s354 = scalar_lea.sflag [#allocation5], 1
    %355 = vsyncpa %s354, 1

</llo_original>
